<compile_context>
chip_gen: v7x
topology: tpu7x:2x2x1
jax: 0.10.0
libtpu: 0.0.40
codegen_flags: <defaults>
</compile_context>

<pallas_src>
import functools
import math

import jax
import jax.numpy as jnp
from jax import lax
from jax.experimental import pallas as pl
from jax.experimental.pallas import tpu as pltpu


def _round_up(x, m):
    return ((x + m - 1) // m) * m


def _docnn_kernel(x_ref, w_ref, b_ref, o_ref, *, max_k, t_chunk, n_chunks,
                  compute_dtype):
    """Fused conv1d (all kernel sizes) -> time-max -> bias -> ReLU, one batch block.

    x_ref: (B_blk, T, D)       unpadded input tile (any float dtype)
    w_ref: (max_k, D, C_pad)   fused conv weights, taps zero-padded to max_k
    b_ref: (1, C_pad)          fused bias (f32)
    o_ref: (B_blk, C_pad)      pooled output tile (lane-dense)
    """
    b_blk, t_in, d = x_ref.shape
    c_pad = o_ref.shape[1]
    t_total = n_chunks * t_chunk
    right_pad = t_total - t_in - 1          # >= max_k by construction

    # Zero-pad the time axis inside VMEM (x is read from HBM exactly once).
    x = x_ref[...].astype(compute_dtype)
    xp = jnp.concatenate(
        [jnp.zeros((b_blk, max_k, d), compute_dtype),
         x,
         jnp.zeros((b_blk, right_pad, d), compute_dtype)],
        axis=1)                              # (b_blk, t_total + max_k - 1, d)

    w = w_ref[...]                           # (max_k, d, c_pad)

    # Running time-max.  0 is always a member of the original window set (the
    # all-zero window of the padding=k conv), so it is an exact initial value.
    run_max = jnp.zeros((b_blk, c_pad), jnp.float32)
    for c in range(n_chunks):                # static unroll; n_chunks is small
        t0 = c * t_chunk
        acc = jnp.zeros((b_blk * t_chunk, c_pad), jnp.float32)
        for k in range(max_k):               # per-tap MXU accumulation, M flattened
            xs = xp[:, t0 + k:t0 + k + t_chunk, :]           # (b_blk, t_chunk, d)
            acc = acc + jnp.dot(xs.reshape(b_blk * t_chunk, d), w[k],
                                preferred_element_type=jnp.float32)
        run_max = jnp.maximum(
            run_max, acc.reshape(b_blk, t_chunk, c_pad).max(axis=1))

    # bias + ReLU hoisted after the pool (monotone & time-invariant -> exact).
    o_ref[...] = jnp.maximum(run_max + b_ref[...], 0.0).astype(o_ref.dtype)


def docnn_encode(x, w_fused, b_fused, *, max_k, batch_block=None,
                 t_chunk_max=512, vmem_budget_bytes=None):
    """Fused DocNN encoder forward. Returns (B, C_pad); caller slices channels."""
    B, T, D = x.shape
    k_taps, d_w, c_pad = w_fused.shape
    assert k_taps == max_k and d_w == D, (w_fused.shape, max_k, D)
    compute_dtype = w_fused.dtype

    # ---- time-window bookkeeping -------------------------------------------
    # Need at least T + max_k + 1 windows so every original per-k (padding=k)
    # window is represented; round up to a multiple of the 8-aligned chunk.
    # Extra windows are all-zero -> value 0 (already in the original set).
    t_needed = T + max_k + 1
    t_chunk = min(_round_up(t_needed, 8), max(8, _round_up(t_chunk_max, 8)))
    n_chunks = -(-t_needed // t_chunk)
    t_total = n_chunks * t_chunk
    t_padded = t_total + max_k - 1           # rows of the in-VMEM padded copy

    # ---- lane/sublane-padding-aware VMEM model ------------------------------
    LANE, SUB = 128, 8
    d_lanes = _round_up(D, LANE)
    c_lanes = _round_up(c_pad, LANE)
    in_bytes = jnp.dtype(x.dtype).itemsize
    cd_bytes = jnp.dtype(compute_dtype).itemsize
    per_row = (
        2 * _round_up(T, SUB) * d_lanes * in_bytes         # double-buffered input
        + _round_up(t_padded, SUB) * d_lanes * cd_bytes    # zero-padded compute copy
        + 2 * t_chunk * d_lanes * cd_bytes                 # live shifted tap slices
        + t_chunk * c_lanes * 4                            # f32 chunk accumulator
        + 4 * c_lanes * 4                                  # running max / epilogue
        + 2 * c_lanes * in_bytes                           # double-buffered output
    )
    fixed = 2 * (max_k * _round_up(D, SUB) * c_lanes * cd_bytes   # weights
                 + SUB * c_lanes * 4)                              # bias

    try:
        vmem_cap = int(pltpu.get_tpu_info().vmem_capacity_bytes)
    except Exception:                         # pragma: no cover - older jax
        vmem_cap = 64 * 1024 * 1024           # v7x-sized fallback, safe everywhere
    if vmem_budget_bytes is None:
        vmem_budget_bytes = max(int(vmem_cap * 0.45), 16 * 1024 * 1024)
    vmem_budget_bytes = min(vmem_budget_bytes, int(vmem_cap * 0.6))

    b8 = _round_up(B, SUB)
    if batch_block is None:
        batch_block = max(SUB,
                          ((vmem_budget_bytes - fixed) // per_row) // SUB * SUB)
    # Keep >= 4 grid steps when the batch allows it (v7x megacore + pipelining).
    batch_block = min(batch_block, max(SUB, _round_up(-(-b8 // 4), SUB)))
    batch_block = max(SUB, min(batch_block, b8))

    b_pad = _round_up(B, batch_block)
    x_in = x if b_pad == B else jnp.pad(x, ((0, b_pad - B), (0, 0), (0, 0)))

    needed = fixed + per_row * batch_block
    vmem_limit = int(min(max(needed * 13 // 10, 32 * 1024 * 1024),
                         int(vmem_cap * 0.85)))

    cost = pl.CostEstimate(
        flops=2 * b_pad * t_total * max_k * D * c_pad,
        transcendentals=0,
        bytes_accessed=(b_pad * T * D * in_bytes
                        + max_k * D * c_pad * cd_bytes
                        + c_pad * 4
                        + b_pad * c_pad * in_bytes))

    kernel = functools.partial(
        _docnn_kernel, max_k=max_k, t_chunk=t_chunk, n_chunks=n_chunks,
        compute_dtype=compute_dtype)

    out = pl.pallas_call(
        kernel,
        out_shape=jax.ShapeDtypeStruct((b_pad, c_pad), x.dtype),
        grid=(b_pad // batch_block,),
        in_specs=[
            pl.BlockSpec((batch_block, T, D), lambda i: (i, 0, 0)),
            pl.BlockSpec((max_k, D, c_pad), lambda i: (0, 0, 0)),
            pl.BlockSpec((1, c_pad), lambda i: (0, 0)),
        ],
        out_specs=pl.BlockSpec((batch_block, c_pad), lambda i: (i, 0)),
        compiler_params=pltpu.CompilerParams(
            dimension_semantics=("parallel",),
            vmem_limit_bytes=vmem_limit),
        cost_estimate=cost,
    )(x_in, w_fused, b_fused)
    return out[:B]


class DocNNEncoderPallas:
    """JAX/Pallas port of pytext DocNNEncoder (eval mode: dropout = identity)."""

    def __init__(self, embed_dim, kernel_num=32, kernel_sizes=(3, 4, 5), *,
                 key, compute_dtype=jnp.bfloat16):
        self.embed_dim = embed_dim
        self.kernel_num = kernel_num
        self.kernel_sizes = tuple(kernel_sizes)
        self.max_k = max(self.kernel_sizes)
        self.out_dim = len(self.kernel_sizes) * kernel_num
        self.compute_dtype = compute_dtype

        # Per-conv params in the torch Conv1d layout (C_out, C_in, k).
        self.torch_params = []
        for ksz in self.kernel_sizes:
            key, wkey, bkey = jax.random.split(key, 3)
            fan_in = embed_dim * ksz
            bound = 1.0 / math.sqrt(fan_in)   # torch Conv1d default init range
            w = jax.random.uniform(
                wkey, (kernel_num, embed_dim, ksz), jnp.float32, -bound, bound)
            b = jax.random.uniform(
                bkey, (kernel_num,), jnp.float32, -bound, bound)
            self.torch_params.append((w, b))

        # Fuse ONCE: (C, D, k) -> (k, D, C), zero-pad taps to max_k (left
        # aligned), concat kernel sizes along output channels, pad channels to
        # a multiple of 128 for lane-dense output stores.
        self.c_pad = _round_up(self.out_dim, 128)
        w_cols, b_cols = [], []
        for ksz, (w, b) in zip(self.kernel_sizes, self.torch_params):
            w_kdc = jnp.transpose(w, (2, 1, 0))                    # (k, D, C)
            w_kdc = jnp.pad(w_kdc, ((0, self.max_k - ksz), (0, 0), (0, 0)))
            w_cols.append(w_kdc)
            b_cols.append(b)
        w_fused = jnp.concatenate(w_cols, axis=2)          # (max_k, D, out_dim)
        b_fused = jnp.concatenate(b_cols, axis=0)          # (out_dim,)
        pad_c = self.c_pad - self.out_dim
        self.w_fused = jnp.pad(
            w_fused, ((0, 0), (0, 0), (0, pad_c))).astype(compute_dtype)
        self.b_fused = (jnp.pad(b_fused, (0, pad_c))
                        .reshape(1, self.c_pad).astype(jnp.float32))

    def __call__(self, embedded_tokens):
        out = docnn_encode(embedded_tokens, self.w_fused, self.b_fused,
                           max_k=self.max_k)
        # Dropout is identity at inference; drop the lane-padding channels.
        return out[:, :self.out_dim]

    def reference(self, embedded_tokens):
        """Pure-JAX (XLA) reference with the same bf16-input / f32-acc math."""
        x = jnp.transpose(embedded_tokens, (0, 2, 1)).astype(self.compute_dtype)
        outs = []
        for ksz, (w, b) in zip(self.kernel_sizes, self.torch_params):
            y = lax.conv_general_dilated(
                x, w.astype(self.compute_dtype),
                window_strides=(1,), padding=[(ksz, ksz)],
                dimension_numbers=("NCW", "OIW", "NCW"),
                preferred_element_type=jnp.float32,
            ) + b[None, :, None]
            outs.append(jnp.max(jax.nn.relu(y), axis=2))
        return jnp.concatenate(outs, axis=1).astype(embedded_tokens.dtype)


if __name__ == "__main__":
    key = jax.random.PRNGKey(0)
    pkey, xkey = jax.random.split(key)

    B, T, D = 2, 8, 32
    kernel_num = 32
    kernel_sizes = (3, 4, 5)

    enc = DocNNEncoderPallas(D, kernel_num, kernel_sizes, key=pkey)
    x = jax.random.normal(xkey, (B, T, D), dtype=jnp.float32)

    out = jax.block_until_ready(enc(x))
    ref = jax.block_until_ready(enc.reference(x))

    assert out.shape == (B, len(kernel_sizes) * kernel_num), out.shape
    err = float(jnp.max(jnp.abs(out - ref)))
    assert err < 1e-3, err
    print("KERNEL_OK")
</pallas_src>

<mosaic_0001>
module attributes {stable_mosaic.version = 11 : i64} {
  func.func @_docnn_kernel(%arg0: i32, %arg1: memref<8x8x32xf32, #tpu.memory_space<vmem>>, %arg2: memref<5x32x128xbf16, #tpu.memory_space<vmem>>, %arg3: memref<1x128xf32, #tpu.memory_space<vmem>>, %arg4: memref<8x128xf32, #tpu.memory_space<vmem>>) attributes {dimension_semantics = [#tpu.dimension_semantics<parallel>], iteration_bounds = array<i64: 1>, scalar_prefetch = 0 : i64, scratch_operands = 0 : i64, tpu.core_type = #tpu.core_type<tc>, window_params = [{transform_indices = @transform_0, window_bounds = array<i64: 8, 8, 32>}, {pipeline_mode = #tpu.pipeline_mode<synchronous>, transform_indices = @transform_1, window_bounds = array<i64: 5, 32, 128>}, {pipeline_mode = #tpu.pipeline_mode<synchronous>, transform_indices = @transform_2, window_bounds = array<i64: 1, 128>}, {transform_indices = @transform_3, window_bounds = array<i64: 8, 128>}]} {
    %c0 = arith.constant 0 : index
    %c0_0 = arith.constant 0 : index
    %c0_1 = arith.constant 0 : index
    %0 = vector.load %arg1[%c0, %c0_0, %c0_1] : memref<8x8x32xf32, #tpu.memory_space<vmem>>, vector<8x8x32xf32>
    %1 = arith.truncf %0 : vector<8x8x32xf32> to vector<8x8x32xbf16>
    %cst = arith.constant 0.000000e+00 : bf16
    %2 = vector.broadcast %cst : bf16 to vector<8x5x32xbf16>
    %cst_2 = arith.constant 0.000000e+00 : bf16
    %3 = vector.broadcast %cst_2 : bf16 to vector<8x7x32xbf16>
    %4 = tpu.concatenate %2, %1, %3 in 1 : vector<8x5x32xbf16>, vector<8x8x32xbf16>, vector<8x7x32xbf16> -> vector<8x20x32xbf16>
    %c0_3 = arith.constant 0 : index
    %c0_4 = arith.constant 0 : index
    %c0_5 = arith.constant 0 : index
    %5 = vector.load %arg2[%c0_3, %c0_4, %c0_5] : memref<5x32x128xbf16, #tpu.memory_space<vmem>>, vector<5x32x128xbf16>
    %cst_6 = arith.constant 0.000000e+00 : f32
    %6 = vector.broadcast %cst_6 : f32 to vector<8x128xf32>
    %cst_7 = arith.constant 0.000000e+00 : f32
    %7 = vector.broadcast %cst_7 : f32 to vector<128x128xf32>
    %8 = vector.extract_strided_slice %4 {offsets = [0, 0, 0], sizes = [8, 16, 32], strides = [1, 1, 1]} : vector<8x20x32xbf16> to vector<8x16x32xbf16>
    %9 = vector.shape_cast %8 : vector<8x16x32xbf16> to vector<128x32xbf16>
    %10 = vector.extract_strided_slice %5 {offsets = [0, 0, 0], sizes = [1, 32, 128], strides = [1, 1, 1]} : vector<5x32x128xbf16> to vector<1x32x128xbf16>
    %11 = vector.shape_cast %10 : vector<1x32x128xbf16> to vector<32x128xbf16>
    %cst_8 = arith.constant dense<0.000000e+00> : vector<128x128xf32>
    %12 = tpu.matmul %9, %11, %cst_8 {dimension_numbers = #tpu.dot_dimension_numbers<[1], [0], [0], [1], [0, 0, 1, 1], [], []>} : vector<128x32xbf16>, vector<32x128xbf16>, vector<128x128xf32> -> vector<128x128xf32>
    %13 = arith.addf %7, %12 : vector<128x128xf32>
    %14 = vector.extract_strided_slice %4 {offsets = [0, 1, 0], sizes = [8, 16, 32], strides = [1, 1, 1]} : vector<8x20x32xbf16> to vector<8x16x32xbf16>
    %15 = vector.shape_cast %14 : vector<8x16x32xbf16> to vector<128x32xbf16>
    %16 = vector.extract_strided_slice %5 {offsets = [1, 0, 0], sizes = [1, 32, 128], strides = [1, 1, 1]} : vector<5x32x128xbf16> to vector<1x32x128xbf16>
    %17 = vector.shape_cast %16 : vector<1x32x128xbf16> to vector<32x128xbf16>
    %cst_9 = arith.constant dense<0.000000e+00> : vector<128x128xf32>
    %18 = tpu.matmul %15, %17, %cst_9 {dimension_numbers = #tpu.dot_dimension_numbers<[1], [0], [0], [1], [0, 0, 1, 1], [], []>} : vector<128x32xbf16>, vector<32x128xbf16>, vector<128x128xf32> -> vector<128x128xf32>
    %19 = arith.addf %13, %18 : vector<128x128xf32>
    %20 = vector.extract_strided_slice %4 {offsets = [0, 2, 0], sizes = [8, 16, 32], strides = [1, 1, 1]} : vector<8x20x32xbf16> to vector<8x16x32xbf16>
    %21 = vector.shape_cast %20 : vector<8x16x32xbf16> to vector<128x32xbf16>
    %22 = vector.extract_strided_slice %5 {offsets = [2, 0, 0], sizes = [1, 32, 128], strides = [1, 1, 1]} : vector<5x32x128xbf16> to vector<1x32x128xbf16>
    %23 = vector.shape_cast %22 : vector<1x32x128xbf16> to vector<32x128xbf16>
    %cst_10 = arith.constant dense<0.000000e+00> : vector<128x128xf32>
    %24 = tpu.matmul %21, %23, %cst_10 {dimension_numbers = #tpu.dot_dimension_numbers<[1], [0], [0], [1], [0, 0, 1, 1], [], []>} : vector<128x32xbf16>, vector<32x128xbf16>, vector<128x128xf32> -> vector<128x128xf32>
    %25 = arith.addf %19, %24 : vector<128x128xf32>
    %26 = vector.extract_strided_slice %4 {offsets = [0, 3, 0], sizes = [8, 16, 32], strides = [1, 1, 1]} : vector<8x20x32xbf16> to vector<8x16x32xbf16>
    %27 = vector.shape_cast %26 : vector<8x16x32xbf16> to vector<128x32xbf16>
    %28 = vector.extract_strided_slice %5 {offsets = [3, 0, 0], sizes = [1, 32, 128], strides = [1, 1, 1]} : vector<5x32x128xbf16> to vector<1x32x128xbf16>
    %29 = vector.shape_cast %28 : vector<1x32x128xbf16> to vector<32x128xbf16>
    %cst_11 = arith.constant dense<0.000000e+00> : vector<128x128xf32>
    %30 = tpu.matmul %27, %29, %cst_11 {dimension_numbers = #tpu.dot_dimension_numbers<[1], [0], [0], [1], [0, 0, 1, 1], [], []>} : vector<128x32xbf16>, vector<32x128xbf16>, vector<128x128xf32> -> vector<128x128xf32>
    %31 = arith.addf %25, %30 : vector<128x128xf32>
    %32 = vector.extract_strided_slice %4 {offsets = [0, 4, 0], sizes = [8, 16, 32], strides = [1, 1, 1]} : vector<8x20x32xbf16> to vector<8x16x32xbf16>
    %33 = vector.shape_cast %32 : vector<8x16x32xbf16> to vector<128x32xbf16>
    %34 = vector.extract_strided_slice %5 {offsets = [4, 0, 0], sizes = [1, 32, 128], strides = [1, 1, 1]} : vector<5x32x128xbf16> to vector<1x32x128xbf16>
    %35 = vector.shape_cast %34 : vector<1x32x128xbf16> to vector<32x128xbf16>
    %cst_12 = arith.constant dense<0.000000e+00> : vector<128x128xf32>
    %36 = tpu.matmul %33, %35, %cst_12 {dimension_numbers = #tpu.dot_dimension_numbers<[1], [0], [0], [1], [0, 0, 1, 1], [], []>} : vector<128x32xbf16>, vector<32x128xbf16>, vector<128x128xf32> -> vector<128x128xf32>
    %37 = arith.addf %31, %36 : vector<128x128xf32>
    %38 = vector.shape_cast %37 : vector<128x128xf32> to vector<8x16x128xf32>
    %cst_13 = arith.constant dense<0xFF800000> : vector<8x128xf32>
    %39 = vector.multi_reduction <maximumf>, %38, %cst_13 [1] : vector<8x16x128xf32> to vector<8x128xf32>
    %40 = arith.maximumf %6, %39 : vector<8x128xf32>
    %c0_14 = arith.constant 0 : index
    %c0_15 = arith.constant 0 : index
    %41 = vector.load %arg3[%c0_14, %c0_15] : memref<1x128xf32, #tpu.memory_space<vmem>>, vector<1x128xf32>
    %42 = vector.broadcast %41 : vector<1x128xf32> to vector<8x128xf32>
    %43 = arith.addf %40, %42 : vector<8x128xf32>
    %cst_16 = arith.constant 0.000000e+00 : f32
    %44 = vector.broadcast %cst_16 : f32 to vector<8x128xf32>
    %45 = arith.maximumf %43, %44 : vector<8x128xf32>
    %c0_17 = arith.constant 0 : index
    %c0_18 = arith.constant 0 : index
    %46 = vector.load %arg4[%c0_17, %c0_18] : memref<8x128xf32, #tpu.memory_space<vmem>>, vector<8x128xf32>
    tpu.vector_store %arg4[%c0_17, %c0_18], %45 {strides = array<i32>} : memref<8x128xf32, #tpu.memory_space<vmem>>, vector<8x128xf32>,
    return
  }
  func.func @transform_0(%arg0: i32) -> (i32, i32, i32) {
    %c0_i32 = arith.constant 0 : i32
    %c0_i32_0 = arith.constant 0 : i32
    %c0_i32_1 = arith.constant 0 : i32
    return %arg0, %c0_i32, %c0_i32_0 : i32, i32, i32
  }
  func.func @transform_1(%arg0: i32) -> (i32, i32, i32) {
    %c0_i32 = arith.constant 0 : i32
    %c0_i32_0 = arith.constant 0 : i32
    %c0_i32_1 = arith.constant 0 : i32
    %c0_i32_2 = arith.constant 0 : i32
    return %c0_i32, %c0_i32_0, %c0_i32_1 : i32, i32, i32
  }
  func.func @transform_2(%arg0: i32) -> (i32, i32) {
    %c0_i32 = arith.constant 0 : i32
    %c0_i32_0 = arith.constant 0 : i32
    %c0_i32_1 = arith.constant 0 : i32
    return %c0_i32, %c0_i32_0 : i32, i32
  }
  func.func @transform_3(%arg0: i32) -> (i32, i32) {
    %c0_i32 = arith.constant 0 : i32
    %c0_i32_0 = arith.constant 0 : i32
    return %arg0, %c0_i32 : i32, i32
  }
}

</mosaic_0001>

<llo_original>
// kernel: tpu_custom_call.1
$region0: #{tpu_custom_call.1}
  #allocation0 [shape = 'u32[]', space=smem, size = 0x4, offset = 0x4, fixed_abs, tag = 'smem constant byte address 0x4 - core index']
  #allocation1 [shape = 'u32[144,128]{1,0:T(1,128)}', space=vmem, size = 0x12000, scoped, tag = 'internal scratch']
  %s0 = inlined_call_operand.hbm [shape: f32[8,8,32], index: 0, kind: input, shape index: {}]
  %s1 = inlined_call_operand.hbm [shape: bf16[5,32,128], index: 1, kind: input, shape index: {}]
  %s2 = inlined_call_operand.vmem [shape: f32[1,128], index: 2, kind: input, shape index: {}]
  %s3 = inlined_call_operand.hbm [shape: f32[8,128], index: 3, kind: output, shape index: {}]
  %s4 = sld [smem:[#allocation0]]
  $region30: #{tpu_custom_call.1} parent=0
    _
  %s6 = ssub.s32 1, %s4
  %s7 = scalar_select 0, %s6, %s4
  $region1: #{tpu_custom_call.1} parent=0
    #allocation2 [shape = 'u8[32768]{0}', space=vmem, size = 0x8000, scoped, tag = 'input window, operand 0, single buffered']
    #allocation3 [shape = 's32[1]{0}', space=sflag, size = 0x4, scoped, tag = 'scoped memory for tpu_custom_call.1']
    #allocation4 [shape = 's32[1]{0}', space=sflag, size = 0x4, scoped, tag = 'scoped memory for tpu_custom_call.1']
    #allocation5 [shape = 'u8[40960]{0}', space=vmem, size = 0xa000, scoped, tag = 'input window, operand 1, single buffered']
    #allocation6 [shape = 's32[1]{0}', space=sflag, size = 0x4, scoped, tag = 'scoped memory for tpu_custom_call.1']
    #allocation7 [shape = 'u8[4096]{0}', space=vmem, size = 0x1000, scoped, tag = 'output window, operand 0, single buffered']
    %8 = vsyncpa [#allocation3], 0
    %9 = vsyncpa [#allocation6], 0
    %10 = vsyncpa [#allocation4], 0
    // Predicated region
    $region2: #{tpu_custom_call.1} parent=1 // pred_check
      _
    $region3: #{tpu_custom_call.1} parent=1 // pred_check_branch
      %12 = sbr.rel (0) target = $region5
    $region4: #{tpu_custom_call.1} parent=1 // pred_region
      %s14 = ssub.s32 1024, 1024
      %15 = vsyncadd [#allocation3], %s14
      %s16 = sshll.u32 [#allocation2], 4
      %s17 = int_to_ptr.vmem [resolvable:$true] %s16
      %22 = dma.hbm_to_vmem [thread:$0]  %s0, 1024, %s17, [#allocation3], 128, 128, 8
    $region5: #{tpu_custom_call.1} parent=1 // pred_fallthru
      _
    // Predicated region
    $region6: #{tpu_custom_call.1} parent=1 // pred_check
      _
    $region7: #{tpu_custom_call.1} parent=1 // pred_check_branch
      %24 = sbr.rel (0) target = $region9
    $region8: #{tpu_custom_call.1} parent=1 // pred_region
      %s26 = ssub.s32 1280, 1280
      %27 = vsyncadd [#allocation6], %s26
      %s28 = sshll.u32 [#allocation5], 4
      %s29 = int_to_ptr.vmem [resolvable:$true] %s28
      %34 = dma.hbm_to_vmem [thread:$0]  %s1, 1280, %s29, [#allocation6], 64, 64, 4
    $region9: #{tpu_custom_call.1} parent=1 // pred_fallthru
      _
    // Predicated region
    $region10: #{tpu_custom_call.1} parent=1 // pred_check
      _
    $region11: #{tpu_custom_call.1} parent=1 // pred_check_branch
      %36 = sbr.rel (0) target = $region13
    $region12: #{tpu_custom_call.1} parent=1 // pred_region
      _
    $region13: #{tpu_custom_call.1} parent=1 // pred_fallthru
      _
    // Predicated region
    $region14: #{tpu_custom_call.1} parent=1 // pred_check
      _
    $region15: #{tpu_custom_call.1} parent=1 // pred_check_branch
      %38 = sbr.rel (0) target = $region17
    $region16: #{tpu_custom_call.1} parent=1 // pred_region
      %39 = dma.done [#allocation3], 1024
    $region17: #{tpu_custom_call.1} parent=1 // pred_fallthru
      _
    // Predicated region
    $region18: #{tpu_custom_call.1} parent=1 // pred_check
      _
    $region19: #{tpu_custom_call.1} parent=1 // pred_check_branch
      %41 = sbr.rel (0) target = $region21
    $region20: #{tpu_custom_call.1} parent=1 // pred_region
      %42 = dma.done [#allocation6], 1280
    $region21: #{tpu_custom_call.1} parent=1 // pred_fallthru
      _
    %v44 = vld [vmem:[#allocation2] sm:$0xff]
    %v45 = vld [vmem:[#allocation2 + $0x8] sm:$0xff]
    %v46 = vld [vmem:[#allocation2 + $0x10] sm:$0xff]
    %v47 = vld [vmem:[#allocation2 + $0x18] sm:$0xff]
    %v48 = vld [vmem:[#allocation2 + $0x20] sm:$0xff]
    %v49 = vld [vmem:[#allocation2 + $0x28] sm:$0xff]
    %v50 = vld [vmem:[#allocation2 + $0x30] sm:$0xff]
    %v51 = vld [vmem:[#allocation2 + $0x38] sm:$0xff]
    %v52 = vpack.c.bf16 %v44, %v44
    %v53 = vpack.c.bf16 %v45, %v45
    %v54 = vpack.c.bf16 %v46, %v46
    %v55 = vpack.c.bf16 %v47, %v47
    %v56 = vpack.c.bf16 %v48, %v48
    %v57 = vpack.c.bf16 %v49, %v49
    %v58 = vpack.c.bf16 %v50, %v50
    %v59 = vpack.c.bf16 %v51, %v51
    %v61 = vshrl.u32 %v52, 16
    %v63 = vrot.slane %v61, 5
    %v64 = vshll.u32 %v52, 16
    %v66 = vrot.slane %v64, 6
    %v67 = vor.u32 %v63, %v66
    %v69 = vshrl.u32 %v53, 16
    %v71 = vrot.slane %v69, 5
    %v72 = vshll.u32 %v53, 16
    %v74 = vrot.slane %v72, 6
    %v75 = vor.u32 %v71, %v74
    %v77 = vshrl.u32 %v54, 16
    %v79 = vrot.slane %v77, 5
    %v80 = vshll.u32 %v54, 16
    %v82 = vrot.slane %v80, 6
    %v83 = vor.u32 %v79, %v82
    %v85 = vshrl.u32 %v55, 16
    %v87 = vrot.slane %v85, 5
    %v88 = vshll.u32 %v55, 16
    %v90 = vrot.slane %v88, 6
    %v91 = vor.u32 %v87, %v90
    %v93 = vshrl.u32 %v56, 16
    %v95 = vrot.slane %v93, 5
    %v96 = vshll.u32 %v56, 16
    %v98 = vrot.slane %v96, 6
    %v99 = vor.u32 %v95, %v98
    %v101 = vshrl.u32 %v57, 16
    %v103 = vrot.slane %v101, 5
    %v104 = vshll.u32 %v57, 16
    %v106 = vrot.slane %v104, 6
    %v107 = vor.u32 %v103, %v106
    %v109 = vshrl.u32 %v58, 16
    %v111 = vrot.slane %v109, 5
    %v112 = vshll.u32 %v58, 16
    %v114 = vrot.slane %v112, 6
    %v115 = vor.u32 %v111, %v114
    %v117 = vshrl.u32 %v59, 16
    %v119 = vrot.slane %v117, 5
    %v120 = vshll.u32 %v59, 16
    %v122 = vrot.slane %v120, 6
    %v123 = vor.u32 %v119, %v122
    %vm132 = vcmask 1042432
    %vm133 = vsmask.f32 2304
    %vm134 = vmand %vm132, %vm133
    %v135 = vsel %vm134, 0, %v67
    %v136 = vsel %vm134, 0, %v75
    %v137 = vsel %vm134, 0, %v83
    %v138 = vsel %vm134, 0, %v91
    %v139 = vsel %vm134, 0, %v99
    %v140 = vsel %vm134, 0, %v107
    %v141 = vsel %vm134, 0, %v115
    %v142 = vsel %vm134, 0, %v123
    %vm143 = vcmask 1046528
    %vm144 = vsmask.f32 6400
    %vm145 = vmand %vm143, %vm144
    %v146 = vsel %vm145, %v135, 0
    %v147 = vsel %vm145, %v136, 0
    %v148 = vsel %vm145, %v137, 0
    %v149 = vsel %vm145, %v138, 0
    %v150 = vsel %vm145, %v139, 0
    %v151 = vsel %vm145, %v140, 0
    %v152 = vsel %vm145, %v141, 0
    %v153 = vsel %vm145, %v142, 0
    %v154 = vld [vmem:[#allocation5] sm:$0xf]
    %v155 = vld [vmem:[#allocation5 + $0x4] sm:$0xf]
    %v156 = vld [vmem:[#allocation5 + $0x8] sm:$0xf]
    %v157 = vld [vmem:[#allocation5 + $0xc] sm:$0xf]
    %v158 = vld [vmem:[#allocation5 + $0x10] sm:$0xf]
    %v159 = vld [vmem:[#allocation5 + $0x14] sm:$0xf]
    %v160 = vld [vmem:[#allocation5 + $0x18] sm:$0xf]
    %v161 = vld [vmem:[#allocation5 + $0x1c] sm:$0xf]
    %v162 = vld [vmem:[#allocation5 + $0x20] sm:$0xf]
    %v163 = vld [vmem:[#allocation5 + $0x24] sm:$0xf]
    %v164 = vld [vmem:[#allocation5 + $0x28] sm:$0xf]
    %v165 = vld [vmem:[#allocation5 + $0x2c] sm:$0xf]
    %v166 = vld [vmem:[#allocation5 + $0x30] sm:$0xf]
    %v167 = vld [vmem:[#allocation5 + $0x34] sm:$0xf]
    %v168 = vld [vmem:[#allocation5 + $0x38] sm:$0xf]
    %v169 = vld [vmem:[#allocation5 + $0x3c] sm:$0xf]
    %v170 = vld [vmem:[#allocation5 + $0x40] sm:$0xf]
    %v171 = vld [vmem:[#allocation5 + $0x44] sm:$0xf]
    %v172 = vld [vmem:[#allocation5 + $0x48] sm:$0xf]
    %v173 = vld [vmem:[#allocation5 + $0x4c] sm:$0xf]
    %vm174 = vsmask.f32 7424
    %v176 = vshrl.u32 %v146, 16
    %v178 = vshll.u32 %v146, 16
    %v180 = vrot.slane %v178, 1
    %v181 = vor.u32 %v176, %v180
    %v183 = vshll.u32 0, 16
    %v185 = vrot.slane %v183, 1
    %v186 = vsel %vm174, %v181, %v185
    %v188 = vshrl.u32 %v147, 16
    %v190 = vshll.u32 %v147, 16
    %v192 = vrot.slane %v190, 1
    %v193 = vor.u32 %v188, %v192
    %v194 = vsel %vm174, %v193, %v185
    %v196 = vshrl.u32 %v148, 16
    %v198 = vshll.u32 %v148, 16
    %v200 = vrot.slane %v198, 1
    %v201 = vor.u32 %v196, %v200
    %v202 = vsel %vm174, %v201, %v185
    %v204 = vshrl.u32 %v149, 16
    %v206 = vshll.u32 %v149, 16
    %v208 = vrot.slane %v206, 1
    %v209 = vor.u32 %v204, %v208
    %v210 = vsel %vm174, %v209, %v185
    %v212 = vshrl.u32 %v150, 16
    %v214 = vshll.u32 %v150, 16
    %v216 = vrot.slane %v214, 1
    %v217 = vor.u32 %v212, %v216
    %v218 = vsel %vm174, %v217, %v185
    %v220 = vshrl.u32 %v151, 16
    %v222 = vshll.u32 %v151, 16
    %v224 = vrot.slane %v222, 1
    %v225 = vor.u32 %v220, %v224
    %v226 = vsel %vm174, %v225, %v185
    %v228 = vshrl.u32 %v152, 16
    %v230 = vshll.u32 %v152, 16
    %v232 = vrot.slane %v230, 1
    %v233 = vor.u32 %v228, %v232
    %v234 = vsel %vm174, %v233, %v185
    %v236 = vshrl.u32 %v153, 16
    %v238 = vshll.u32 %v153, 16
    %v240 = vrot.slane %v238, 1
    %v241 = vor.u32 %v236, %v240
    %v242 = vsel %vm174, %v241, %v185
    %v247 = vunpack.c.l.b16 %v158
    %v248 = vunpack.c.l.b16 %v159
    %v249 = vunpack.c.l.b16 %v160
    %v250 = vunpack.c.l.b16 %v161
    %v251 = vpack.c.b16 %v248, %v247
    %v252 = vpack.c.b16 %v250, %v249
    %vm255 = vcmask 261120
    %v257 = vsel %vm255, %v186, 0
    %v260 = vsel %vm255, %v194, 0
    %v263 = vsel %vm255, %v202, 0
    %v266 = vsel %vm255, %v210, 0
    %v269 = vsel %vm255, %v218, 0
    %v272 = vsel %vm255, %v226, 0
    %v275 = vsel %vm255, %v234, 0
    %v278 = vsel %vm255, %v242, 0
    %280 = vmatprep.subr.bf16.mxu0 0
    %281 = vmatpush1.bf16.msra.mxu0 %v251
    %282 = vmatprep.subr.bf16.mxu0 0
    %283 = vmatpush1.bf16.msra.mxu0 %v252
    %284 = vmatprep.subr.bf16.mxu0 0
    %285 = vmatpush1.bf16.msra.mxu0 0
    %286 = vmatprep.subr.bf16.mxu0 0
    %287 = vmatpush1.bf16.msra.mxu0 0
    %288 = vmatprep.subr.bf16.mxu0 0
    %289 = vmatpush1.bf16.msra.mxu0 0
    %290 = vmatprep.subr.bf16.mxu0 0
    %291 = vmatpush1.bf16.msra.mxu0 0
    %292 = vmatprep.subr.bf16.mxu0 0
    %293 = vmatpush1.bf16.msra.mxu0 0
    %294 = vmatprep.subr.bf16.mxu0 0
    %295 = vmatpush1.bf16.msra.mxu0 0
    %296 = vmatprep.subr.bf16.mxu0 0
    %297 = vmatpush1.bf16.msra.mxu0 0
    %298 = vmatprep.subr.bf16.mxu0 0
    %299 = vmatpush1.bf16.msra.mxu0 0
    %300 = vmatprep.subr.bf16.mxu0 0
    %301 = vmatpush1.bf16.msra.mxu0 0
    %302 = vmatprep.subr.bf16.mxu0 0
    %303 = vmatpush1.bf16.msra.mxu0 0
    %304 = vmatprep.subr.bf16.mxu0 0
    %305 = vmatpush1.bf16.msra.mxu0 0
    %306 = vmatprep.subr.bf16.mxu0 0
    %307 = vmatpush1.bf16.msra.mxu0 0
    %308 = vmatprep.subr.bf16.mxu0 0
    %309 = vmatpush1.bf16.msra.mxu0 0
    %310 = vmatprep.subr.bf16.mxu0 0
    %311 = vmatpush1.bf16.msra.mxu0 0
    %312 = vmatprep.mubr.bf16.mxu0 0
    %313 = vmatmul.mubr.bf16.gmra.mrb[0].mxu0 %v257
    %v314 = vpop.f32.mrb[0].mxu0
    %v315 = vadd.f32 0.0, %v314
    %v316 = vpop.f32.mrb[0].mxu0
    %v317 = vpop.f32.mrb[0].mxu0
    %v318 = vadd.f32 0.0, %v317
    %v319 = vpop.f32.mrb[0].mxu0
    %320 = vmatprep.mubr.bf16.mxu0 0
    %321 = vmatmul.mubr.bf16.gmra.mrb[0].mxu0 %v260
    %v322 = vpop.f32.mrb[0].mxu0
    %v323 = vadd.f32 0.0, %v322
    %v324 = vpop.f32.mrb[0].mxu0
    %v325 = vpop.f32.mrb[0].mxu0
    %v326 = vadd.f32 0.0, %v325
    %v327 = vpop.f32.mrb[0].mxu0
    %328 = vmatprep.mubr.bf16.mxu0 0
    %329 = vmatmul.mubr.bf16.gmra.mrb[0].mxu0 %v263
    %v330 = vpop.f32.mrb[0].mxu0
    %v331 = vadd.f32 0.0, %v330
    %v332 = vpop.f32.mrb[0].mxu0
    %v333 = vpop.f32.mrb[0].mxu0
    %v334 = vadd.f32 0.0, %v333
    %v335 = vpop.f32.mrb[0].mxu0
    %336 = vmatprep.mubr.bf16.mxu0 0
    %337 = vmatmul.mubr.bf16.gmra.mrb[0].mxu0 %v266
    %v338 = vpop.f32.mrb[0].mxu0
    %v339 = vadd.f32 0.0, %v338
    %v340 = vpop.f32.mrb[0].mxu0
    %v341 = vpop.f32.mrb[0].mxu0
    %v342 = vadd.f32 0.0, %v341
    %v343 = vpop.f32.mrb[0].mxu0
    %344 = vmatprep.mubr.bf16.mxu0 0
    %345 = vmatmul.mubr.bf16.gmra.mrb[0].mxu0 %v269
    %v346 = vpop.f32.mrb[0].mxu0
    %v347 = vadd.f32 0.0, %v346
    %v348 = vpop.f32.mrb[0].mxu0
    %v349 = vpop.f32.mrb[0].mxu0
    %v350 = vadd.f32 0.0, %v349
    %v351 = vpop.f32.mrb[0].mxu0
    %352 = vmatprep.mubr.bf16.mxu0 0
    %353 = vmatmul.mubr.bf16.gmra.mrb[0].mxu0 %v272
    %v354 = vpop.f32.mrb[0].mxu0
    %v355 = vadd.f32 0.0, %v354
    %v356 = vpop.f32.mrb[0].mxu0
    %v357 = vpop.f32.mrb[0].mxu0
    %v358 = vadd.f32 0.0, %v357
    %v359 = vpop.f32.mrb[0].mxu0
    %360 = vmatprep.mubr.bf16.mxu0 0
    %361 = vmatmul.mubr.bf16.gmra.mrb[0].mxu0 %v275
    %v362 = vpop.f32.mrb[0].mxu0
    %v363 = vadd.f32 0.0, %v362
    %v364 = vpop.f32.mrb[0].mxu0
    %v365 = vpop.f32.mrb[0].mxu0
    %v366 = vadd.f32 0.0, %v365
    %v367 = vpop.f32.mrb[0].mxu0
    %368 = vmatprep.mubr.bf16.mxu0 0
    %369 = vmatmul.mubr.bf16.gmra.mrb[0].mxu0 %v278
    %v370 = vpop.f32.mrb[0].mxu0
    %v371 = vadd.f32 0.0, %v370
    %v372 = vpop.f32.mrb[0].mxu0
    %v373 = vpop.f32.mrb[0].mxu0
    %v374 = vadd.f32 0.0, %v373
    %v375 = vpop.f32.mrb[0].mxu0
    %376 = vdwg.mxu0
    %v381 = vunpack.c.l.b16 %v154
    %v382 = vunpack.c.l.b16 %v155
    %v383 = vunpack.c.l.b16 %v156
    %v384 = vunpack.c.l.b16 %v157
    %v385 = vpack.c.b16 %v382, %v381
    %v386 = vpack.c.b16 %v384, %v383
    %v389 = vsel %vm255, %v146, 0
    %v391 = vsel %vm255, %v147, 0
    %v393 = vsel %vm255, %v148, 0
    %v395 = vsel %vm255, %v149, 0
    %v397 = vsel %vm255, %v150, 0
    %v399 = vsel %vm255, %v151, 0
    %v401 = vsel %vm255, %v152, 0
    %v403 = vsel %vm255, %v153, 0
    %405 = vmatprep.subr.bf16.mxu0 0
    %406 = vmatpush1.bf16.msra.mxu0 %v385
    %407 = vmatprep.subr.bf16.mxu0 0
    %408 = vmatpush1.bf16.msra.mxu0 %v386
    %409 = vmatprep.subr.bf16.mxu0 0
    %410 = vmatpush1.bf16.msra.mxu0 0
    %411 = vmatprep.subr.bf16.mxu0 0
    %412 = vmatpush1.bf16.msra.mxu0 0
    %413 = vmatprep.subr.bf16.mxu0 0
    %414 = vmatpush1.bf16.msra.mxu0 0
    %415 = vmatprep.subr.bf16.mxu0 0
    %416 = vmatpush1.bf16.msra.mxu0 0
    %417 = vmatprep.subr.bf16.mxu0 0
    %418 = vmatpush1.bf16.msra.mxu0 0
    %419 = vmatprep.subr.bf16.mxu0 0
    %420 = vmatpush1.bf16.msra.mxu0 0
    %421 = vmatprep.subr.bf16.mxu0 0
    %422 = vmatpush1.bf16.msra.mxu0 0
    %423 = vmatprep.subr.bf16.mxu0 0
    %424 = vmatpush1.bf16.msra.mxu0 0
    %425 = vmatprep.subr.bf16.mxu0 0
    %426 = vmatpush1.bf16.msra.mxu0 0
    %427 = vmatprep.subr.bf16.mxu0 0
    %428 = vmatpush1.bf16.msra.mxu0 0
    %429 = vmatprep.subr.bf16.mxu0 0
    %430 = vmatpush1.bf16.msra.mxu0 0
    %431 = vmatprep.subr.bf16.mxu0 0
    %432 = vmatpush1.bf16.msra.mxu0 0
    %433 = vmatprep.subr.bf16.mxu0 0
    %434 = vmatpush1.bf16.msra.mxu0 0
    %435 = vmatprep.subr.bf16.mxu0 0
    %436 = vmatpush1.bf16.msra.mxu0 0
    %437 = vmatprep.mubr.bf16.mxu0 0
    %438 = vmatmul.mubr.bf16.gmra.mrb[0].mxu0 %v389
    %v439 = vpop.f32.mrb[0].mxu0
    %v440 = vadd.f32 %v315, %v439
    %v441 = vpop.f32.mrb[0].mxu0
    %v442 = vpop.f32.mrb[0].mxu0
    %v443 = vadd.f32 %v318, %v442
    %v444 = vpop.f32.mrb[0].mxu0
    %445 = vmatprep.mubr.bf16.mxu0 0
    %446 = vmatmul.mubr.bf16.gmra.mrb[0].mxu0 %v391
    %v447 = vpop.f32.mrb[0].mxu0
    %v448 = vadd.f32 %v323, %v447
    %v449 = vpop.f32.mrb[0].mxu0
    %v450 = vpop.f32.mrb[0].mxu0
    %v451 = vadd.f32 %v326, %v450
    %v452 = vpop.f32.mrb[0].mxu0
    %453 = vmatprep.mubr.bf16.mxu0 0
    %454 = vmatmul.mubr.bf16.gmra.mrb[0].mxu0 %v393
    %v455 = vpop.f32.mrb[0].mxu0
    %v456 = vadd.f32 %v331, %v455
    %v457 = vpop.f32.mrb[0].mxu0
    %v458 = vpop.f32.mrb[0].mxu0
    %v459 = vadd.f32 %v334, %v458
    %v460 = vpop.f32.mrb[0].mxu0
    %461 = vmatprep.mubr.bf16.mxu0 0
    %462 = vmatmul.mubr.bf16.gmra.mrb[0].mxu0 %v395
    %v463 = vpop.f32.mrb[0].mxu0
    %v464 = vadd.f32 %v339, %v463
    %v465 = vpop.f32.mrb[0].mxu0
    %v466 = vpop.f32.mrb[0].mxu0
    %v467 = vadd.f32 %v342, %v466
    %v468 = vpop.f32.mrb[0].mxu0
    %469 = vmatprep.mubr.bf16.mxu0 0
    %470 = vmatmul.mubr.bf16.gmra.mrb[0].mxu0 %v397
    %v471 = vpop.f32.mrb[0].mxu0
    %v472 = vadd.f32 %v347, %v471
    %v473 = vpop.f32.mrb[0].mxu0
    %v474 = vpop.f32.mrb[0].mxu0
    %v475 = vadd.f32 %v350, %v474
    %v476 = vpop.f32.mrb[0].mxu0
    %477 = vmatprep.mubr.bf16.mxu0 0
    %478 = vmatmul.mubr.bf16.gmra.mrb[0].mxu0 %v399
    %v479 = vpop.f32.mrb[0].mxu0
    %v480 = vadd.f32 %v355, %v479
    %v481 = vpop.f32.mrb[0].mxu0
    %v482 = vpop.f32.mrb[0].mxu0
    %v483 = vadd.f32 %v358, %v482
    %v484 = vpop.f32.mrb[0].mxu0
    %485 = vmatprep.mubr.bf16.mxu0 0
    %486 = vmatmul.mubr.bf16.gmra.mrb[0].mxu0 %v401
    %v487 = vpop.f32.mrb[0].mxu0
    %v488 = vadd.f32 %v363, %v487
    %v489 = vpop.f32.mrb[0].mxu0
    %v490 = vpop.f32.mrb[0].mxu0
    %v491 = vadd.f32 %v366, %v490
    %v492 = vpop.f32.mrb[0].mxu0
    %493 = vmatprep.mubr.bf16.mxu0 0
    %494 = vmatmul.mubr.bf16.gmra.mrb[0].mxu0 %v403
    %v495 = vpop.f32.mrb[0].mxu0
    %v496 = vadd.f32 %v371, %v495
    %v497 = vpop.f32.mrb[0].mxu0
    %v498 = vpop.f32.mrb[0].mxu0
    %v499 = vadd.f32 %v374, %v498
    %v500 = vpop.f32.mrb[0].mxu0
    %501 = vdwg.mxu0
    %v511 = vrot.slane %v146, 1
    %v512 = vrot.slane 0, 1
    %v513 = vsel %vm143, %v511, %v512
    %v514 = vrot.slane %v147, 1
    %v515 = vsel %vm143, %v514, %v512
    %v516 = vrot.slane %v148, 1
    %v517 = vsel %vm143, %v516, %v512
    %v518 = vrot.slane %v149, 1
    %v519 = vsel %vm143, %v518, %v512
    %v520 = vrot.slane %v150, 1
    %v521 = vsel %vm143, %v520, %v512
    %v522 = vrot.slane %v151, 1
    %v523 = vsel %vm143, %v522, %v512
    %v524 = vrot.slane %v152, 1
    %v525 = vsel %vm143, %v524, %v512
    %v526 = vrot.slane %v153, 1
    %v527 = vsel %vm143, %v526, %v512
    %v532 = vunpack.c.l.b16 %v162
    %v533 = vunpack.c.l.b16 %v163
    %v534 = vunpack.c.l.b16 %v164
    %v535 = vunpack.c.l.b16 %v165
    %v536 = vpack.c.b16 %v533, %v532
    %v537 = vpack.c.b16 %v535, %v534
    %v541 = vsel %vm255, %v513, 0
    %v544 = vsel %vm255, %v515, 0
    %v547 = vsel %vm255, %v517, 0
    %v550 = vsel %vm255, %v519, 0
    %v553 = vsel %vm255, %v521, 0
    %v556 = vsel %vm255, %v523, 0
    %v559 = vsel %vm255, %v525, 0
    %v562 = vsel %vm255, %v527, 0
    %564 = vmatprep.subr.bf16.mxu0 0
    %565 = vmatpush1.bf16.msra.mxu0 %v536
    %566 = vmatprep.subr.bf16.mxu0 0
    %567 = vmatpush1.bf16.msra.mxu0 %v537
    %568 = vmatprep.subr.bf16.mxu0 0
    %569 = vmatpush1.bf16.msra.mxu0 0
    %570 = vmatprep.subr.bf16.mxu0 0
    %571 = vmatpush1.bf16.msra.mxu0 0
    %572 = vmatprep.subr.bf16.mxu0 0
    %573 = vmatpush1.bf16.msra.mxu0 0
    %574 = vmatprep.subr.bf16.mxu0 0
    %575 = vmatpush1.bf16.msra.mxu0 0
    %576 = vmatprep.subr.bf16.mxu0 0
    %577 = vmatpush1.bf16.msra.mxu0 0
    %578 = vmatprep.subr.bf16.mxu0 0
    %579 = vmatpush1.bf16.msra.mxu0 0
    %580 = vmatprep.subr.bf16.mxu0 0
    %581 = vmatpush1.bf16.msra.mxu0 0
    %582 = vmatprep.subr.bf16.mxu0 0
    %583 = vmatpush1.bf16.msra.mxu0 0
    %584 = vmatprep.subr.bf16.mxu0 0
    %585 = vmatpush1.bf16.msra.mxu0 0
    %586 = vmatprep.subr.bf16.mxu0 0
    %587 = vmatpush1.bf16.msra.mxu0 0
    %588 = vmatprep.subr.bf16.mxu0 0
    %589 = vmatpush1.bf16.msra.mxu0 0
    %590 = vmatprep.subr.bf16.mxu0 0
    %591 = vmatpush1.bf16.msra.mxu0 0
    %592 = vmatprep.subr.bf16.mxu0 0
    %593 = vmatpush1.bf16.msra.mxu0 0
    %594 = vmatprep.subr.bf16.mxu0 0
    %595 = vmatpush1.bf16.msra.mxu0 0
    %596 = vmatprep.mubr.bf16.mxu0 0
    %597 = vmatmul.mubr.bf16.gmra.mrb[0].mxu0 %v541
    %v598 = vpop.f32.mrb[0].mxu0
    %v599 = vadd.f32 0.0, %v598
    %v600 = vpop.f32.mrb[0].mxu0
    %v601 = vpop.f32.mrb[0].mxu0
    %v602 = vadd.f32 0.0, %v601
    %v603 = vpop.f32.mrb[0].mxu0
    %604 = vmatprep.mubr.bf16.mxu0 0
    %605 = vmatmul.mubr.bf16.gmra.mrb[0].mxu0 %v544
    %v606 = vpop.f32.mrb[0].mxu0
    %v607 = vadd.f32 0.0, %v606
    %v608 = vpop.f32.mrb[0].mxu0
    %v609 = vpop.f32.mrb[0].mxu0
    %v610 = vadd.f32 0.0, %v609
    %v611 = vpop.f32.mrb[0].mxu0
    %612 = vmatprep.mubr.bf16.mxu0 0
    %613 = vmatmul.mubr.bf16.gmra.mrb[0].mxu0 %v547
    %v614 = vpop.f32.mrb[0].mxu0
    %v615 = vadd.f32 0.0, %v614
    %v616 = vpop.f32.mrb[0].mxu0
    %v617 = vpop.f32.mrb[0].mxu0
    %v618 = vadd.f32 0.0, %v617
    %v619 = vpop.f32.mrb[0].mxu0
    %620 = vmatprep.mubr.bf16.mxu0 0
    %621 = vmatmul.mubr.bf16.gmra.mrb[0].mxu0 %v550
    %v622 = vpop.f32.mrb[0].mxu0
    %v623 = vadd.f32 0.0, %v622
    %v624 = vpop.f32.mrb[0].mxu0
    %v625 = vpop.f32.mrb[0].mxu0
    %v626 = vadd.f32 0.0, %v625
    %v627 = vpop.f32.mrb[0].mxu0
    %628 = vmatprep.mubr.bf16.mxu0 0
    %629 = vmatmul.mubr.bf16.gmra.mrb[0].mxu0 %v553
    %v630 = vpop.f32.mrb[0].mxu0
    %v631 = vadd.f32 0.0, %v630
    %v632 = vpop.f32.mrb[0].mxu0
    %v633 = vpop.f32.mrb[0].mxu0
    %v634 = vadd.f32 0.0, %v633
    %v635 = vpop.f32.mrb[0].mxu0
    %636 = vmatprep.mubr.bf16.mxu0 0
    %637 = vmatmul.mubr.bf16.gmra.mrb[0].mxu0 %v556
    %v638 = vpop.f32.mrb[0].mxu0
    %v639 = vadd.f32 0.0, %v638
    %v640 = vpop.f32.mrb[0].mxu0
    %v641 = vpop.f32.mrb[0].mxu0
    %v642 = vadd.f32 0.0, %v641
    %v643 = vpop.f32.mrb[0].mxu0
    %644 = vmatprep.mubr.bf16.mxu0 0
    %645 = vmatmul.mubr.bf16.gmra.mrb[0].mxu0 %v559
    %v646 = vpop.f32.mrb[0].mxu0
    %v647 = vadd.f32 0.0, %v646
    %v648 = vpop.f32.mrb[0].mxu0
    %v649 = vpop.f32.mrb[0].mxu0
    %v650 = vadd.f32 0.0, %v649
    %v651 = vpop.f32.mrb[0].mxu0
    %652 = vmatprep.mubr.bf16.mxu0 0
    %653 = vmatmul.mubr.bf16.gmra.mrb[0].mxu0 %v562
    %v654 = vpop.f32.mrb[0].mxu0
    %v655 = vadd.f32 0.0, %v654
    %v656 = vpop.f32.mrb[0].mxu0
    %v657 = vpop.f32.mrb[0].mxu0
    %v658 = vadd.f32 0.0, %v657
    %v659 = vpop.f32.mrb[0].mxu0
    %660 = vdwg.mxu0
    %v661 = vadd.f32 %v440, %v599
    %v662 = vadd.f32 %v443, %v602
    %v663 = vadd.f32 %v448, %v607
    %v664 = vadd.f32 %v451, %v610
    %v665 = vadd.f32 %v456, %v615
    %v666 = vadd.f32 %v459, %v618
    %v667 = vadd.f32 %v464, %v623
    %v668 = vadd.f32 %v467, %v626
    %v669 = vadd.f32 %v472, %v631
    %v670 = vadd.f32 %v475, %v634
    %v671 = vadd.f32 %v480, %v639
    %v672 = vadd.f32 %v483, %v642
    %v673 = vadd.f32 %v488, %v647
    %v674 = vadd.f32 %v491, %v650
    %v675 = vadd.f32 %v496, %v655
    %v676 = vadd.f32 %v499, %v658
    %v677 = vrot.slane %v176, 1
    %v678 = vrot.slane %v178, 2
    %v679 = vor.u32 %v677, %v678
    %v680 = vshrl.u32 0, 16
    %v682 = vrot.slane %v680, 1
    %v683 = vrot.slane %v183, 2
    %v684 = vor.u32 %v682, %v683
    %v685 = vsel %vm144, %v679, %v684
    %v686 = vrot.slane %v188, 1
    %v687 = vrot.slane %v190, 2
    %v688 = vor.u32 %v686, %v687
    %v689 = vsel %vm144, %v688, %v684
    %v690 = vrot.slane %v196, 1
    %v691 = vrot.slane %v198, 2
    %v692 = vor.u32 %v690, %v691
    %v693 = vsel %vm144, %v692, %v684
    %v694 = vrot.slane %v204, 1
    %v695 = vrot.slane %v206, 2
    %v696 = vor.u32 %v694, %v695
    %v697 = vsel %vm144, %v696, %v684
    %v698 = vrot.slane %v212, 1
    %v699 = vrot.slane %v214, 2
    %v700 = vor.u32 %v698, %v699
    %v701 = vsel %vm144, %v700, %v684
    %v702 = vrot.slane %v220, 1
    %v703 = vrot.slane %v222, 2
    %v704 = vor.u32 %v702, %v703
    %v705 = vsel %vm144, %v704, %v684
    %v706 = vrot.slane %v228, 1
    %v707 = vrot.slane %v230, 2
    %v708 = vor.u32 %v706, %v707
    %v709 = vsel %vm144, %v708, %v684
    %v710 = vrot.slane %v236, 1
    %v711 = vrot.slane %v238, 2
    %v712 = vor.u32 %v710, %v711
    %v713 = vsel %vm144, %v712, %v684
    %v718 = vunpack.c.l.b16 %v166
    %v719 = vunpack.c.l.b16 %v167
    %v720 = vunpack.c.l.b16 %v168
    %v721 = vunpack.c.l.b16 %v169
    %v722 = vpack.c.b16 %v719, %v718
    %v723 = vpack.c.b16 %v721, %v720
    %v727 = vsel %vm255, %v685, 0
    %v730 = vsel %vm255, %v689, 0
    %v733 = vsel %vm255, %v693, 0
    %v736 = vsel %vm255, %v697, 0
    %v739 = vsel %vm255, %v701, 0
    %v742 = vsel %vm255, %v705, 0
    %v745 = vsel %vm255, %v709, 0
    %v748 = vsel %vm255, %v713, 0
    %750 = vmatprep.subr.bf16.mxu0 0
    %751 = vmatpush1.bf16.msra.mxu0 %v722
    %752 = vmatprep.subr.bf16.mxu0 0
    %753 = vmatpush1.bf16.msra.mxu0 %v723
    %754 = vmatprep.subr.bf16.mxu0 0
    %755 = vmatpush1.bf16.msra.mxu0 0
    %756 = vmatprep.subr.bf16.mxu0 0
    %757 = vmatpush1.bf16.msra.mxu0 0
    %758 = vmatprep.subr.bf16.mxu0 0
    %759 = vmatpush1.bf16.msra.mxu0 0
    %760 = vmatprep.subr.bf16.mxu0 0
    %761 = vmatpush1.bf16.msra.mxu0 0
    %762 = vmatprep.subr.bf16.mxu0 0
    %763 = vmatpush1.bf16.msra.mxu0 0
    %764 = vmatprep.subr.bf16.mxu0 0
    %765 = vmatpush1.bf16.msra.mxu0 0
    %766 = vmatprep.subr.bf16.mxu0 0
    %767 = vmatpush1.bf16.msra.mxu0 0
    %768 = vmatprep.subr.bf16.mxu0 0
    %769 = vmatpush1.bf16.msra.mxu0 0
    %770 = vmatprep.subr.bf16.mxu0 0
    %771 = vmatpush1.bf16.msra.mxu0 0
    %772 = vmatprep.subr.bf16.mxu0 0
    %773 = vmatpush1.bf16.msra.mxu0 0
    %774 = vmatprep.subr.bf16.mxu0 0
    %775 = vmatpush1.bf16.msra.mxu0 0
    %776 = vmatprep.subr.bf16.mxu0 0
    %777 = vmatpush1.bf16.msra.mxu0 0
    %778 = vmatprep.subr.bf16.mxu0 0
    %779 = vmatpush1.bf16.msra.mxu0 0
    %780 = vmatprep.subr.bf16.mxu0 0
    %781 = vmatpush1.bf16.msra.mxu0 0
    %782 = vmatprep.mubr.bf16.mxu0 0
    %783 = vmatmul.mubr.bf16.gmra.mrb[0].mxu0 %v727
    %v784 = vpop.f32.mrb[0].mxu0
    %v785 = vadd.f32 0.0, %v784
    %v786 = vpop.f32.mrb[0].mxu0
    %v787 = vpop.f32.mrb[0].mxu0
    %v788 = vadd.f32 0.0, %v787
    %v789 = vpop.f32.mrb[0].mxu0
    %790 = vmatprep.mubr.bf16.mxu0 0
    %791 = vmatmul.mubr.bf16.gmra.mrb[0].mxu0 %v730
    %v792 = vpop.f32.mrb[0].mxu0
    %v793 = vadd.f32 0.0, %v792
    %v794 = vpop.f32.mrb[0].mxu0
    %v795 = vpop.f32.mrb[0].mxu0
    %v796 = vadd.f32 0.0, %v795
    %v797 = vpop.f32.mrb[0].mxu0
    %798 = vmatprep.mubr.bf16.mxu0 0
    %799 = vmatmul.mubr.bf16.gmra.mrb[0].mxu0 %v733
    %v800 = vpop.f32.mrb[0].mxu0
    %v801 = vadd.f32 0.0, %v800
    %v802 = vpop.f32.mrb[0].mxu0
    %v803 = vpop.f32.mrb[0].mxu0
    %v804 = vadd.f32 0.0, %v803
    %v805 = vpop.f32.mrb[0].mxu0
    %806 = vmatprep.mubr.bf16.mxu0 0
    %807 = vmatmul.mubr.bf16.gmra.mrb[0].mxu0 %v736
    %v808 = vpop.f32.mrb[0].mxu0
    %v809 = vadd.f32 0.0, %v808
    %v810 = vpop.f32.mrb[0].mxu0
    %v811 = vpop.f32.mrb[0].mxu0
    %v812 = vadd.f32 0.0, %v811
    %v813 = vpop.f32.mrb[0].mxu0
    %814 = vmatprep.mubr.bf16.mxu0 0
    %815 = vmatmul.mubr.bf16.gmra.mrb[0].mxu0 %v739
    %v816 = vpop.f32.mrb[0].mxu0
    %v817 = vadd.f32 0.0, %v816
    %v818 = vpop.f32.mrb[0].mxu0
    %v819 = vpop.f32.mrb[0].mxu0
    %v820 = vadd.f32 0.0, %v819
    %v821 = vpop.f32.mrb[0].mxu0
    %822 = vmatprep.mubr.bf16.mxu0 0
    %823 = vmatmul.mubr.bf16.gmra.mrb[0].mxu0 %v742
    %v824 = vpop.f32.mrb[0].mxu0
    %v825 = vadd.f32 0.0, %v824
    %v826 = vpop.f32.mrb[0].mxu0
    %v827 = vpop.f32.mrb[0].mxu0
    %v828 = vadd.f32 0.0, %v827
    %v829 = vpop.f32.mrb[0].mxu0
    %830 = vmatprep.mubr.bf16.mxu0 0
    %831 = vmatmul.mubr.bf16.gmra.mrb[0].mxu0 %v745
    %v832 = vpop.f32.mrb[0].mxu0
    %v833 = vadd.f32 0.0, %v832
    %v834 = vpop.f32.mrb[0].mxu0
    %v835 = vpop.f32.mrb[0].mxu0
    %v836 = vadd.f32 0.0, %v835
    %v837 = vpop.f32.mrb[0].mxu0
    %838 = vmatprep.mubr.bf16.mxu0 0
    %839 = vmatmul.mubr.bf16.gmra.mrb[0].mxu0 %v748
    %v840 = vpop.f32.mrb[0].mxu0
    %v841 = vadd.f32 0.0, %v840
    %v842 = vpop.f32.mrb[0].mxu0
    %v843 = vpop.f32.mrb[0].mxu0
    %v844 = vadd.f32 0.0, %v843
    %v845 = vpop.f32.mrb[0].mxu0
    %846 = vdwg.mxu0
    %v847 = vadd.f32 %v661, %v785
    %v848 = vadd.f32 %v662, %v788
    %v849 = vadd.f32 %v663, %v793
    %v850 = vadd.f32 %v664, %v796
    %v851 = vadd.f32 %v665, %v801
    %v852 = vadd.f32 %v666, %v804
    %v853 = vadd.f32 %v667, %v809
    %v854 = vadd.f32 %v668, %v812
    %v855 = vadd.f32 %v669, %v817
    %v856 = vadd.f32 %v670, %v820
    %v857 = vadd.f32 %v671, %v825
    %v858 = vadd.f32 %v672, %v828
    %v859 = vadd.f32 %v673, %v833
    %v860 = vadd.f32 %v674, %v836
    %v861 = vadd.f32 %v675, %v841
    %v862 = vadd.f32 %v676, %v844
    %vm863 = vcmask 1045504
    %v864 = vrot.slane %v146, 2
    %v865 = vrot.slane 0, 2
    %v866 = vsel %vm863, %v864, %v865
    %v867 = vrot.slane %v147, 2
    %v868 = vsel %vm863, %v867, %v865
    %v869 = vrot.slane %v148, 2
    %v870 = vsel %vm863, %v869, %v865
    %v871 = vrot.slane %v149, 2
    %v872 = vsel %vm863, %v871, %v865
    %v873 = vrot.slane %v150, 2
    %v874 = vsel %vm863, %v873, %v865
    %v875 = vrot.slane %v151, 2
    %v876 = vsel %vm863, %v875, %v865
    %v877 = vrot.slane %v152, 2
    %v878 = vsel %vm863, %v877, %v865
    %v879 = vrot.slane %v153, 2
    %v880 = vsel %vm863, %v879, %v865
    %v885 = vunpack.c.l.b16 %v170
    %v886 = vunpack.c.l.b16 %v171
    %v887 = vunpack.c.l.b16 %v172
    %v888 = vunpack.c.l.b16 %v173
    %v889 = vpack.c.b16 %v886, %v885
    %v890 = vpack.c.b16 %v888, %v887
    %v894 = vsel %vm255, %v866, 0
    %v897 = vsel %vm255, %v868, 0
    %v900 = vsel %vm255, %v870, 0
    %v903 = vsel %vm255, %v872, 0
    %v906 = vsel %vm255, %v874, 0
    %v909 = vsel %vm255, %v876, 0
    %v912 = vsel %vm255, %v878, 0
    %v915 = vsel %vm255, %v880, 0
    %917 = vmatprep.subr.bf16.mxu0 0
    %918 = vmatpush1.bf16.msra.mxu0 %v889
    %919 = vmatprep.subr.bf16.mxu0 0
    %920 = vmatpush1.bf16.msra.mxu0 %v890
    %921 = vmatprep.subr.bf16.mxu0 0
    %922 = vmatpush1.bf16.msra.mxu0 0
    %923 = vmatprep.subr.bf16.mxu0 0
    %924 = vmatpush1.bf16.msra.mxu0 0
    %925 = vmatprep.subr.bf16.mxu0 0
    %926 = vmatpush1.bf16.msra.mxu0 0
    %927 = vmatprep.subr.bf16.mxu0 0
    %928 = vmatpush1.bf16.msra.mxu0 0
    %929 = vmatprep.subr.bf16.mxu0 0
    %930 = vmatpush1.bf16.msra.mxu0 0
    %931 = vmatprep.subr.bf16.mxu0 0
    %932 = vmatpush1.bf16.msra.mxu0 0
    %933 = vmatprep.subr.bf16.mxu0 0
    %934 = vmatpush1.bf16.msra.mxu0 0
    %935 = vmatprep.subr.bf16.mxu0 0
    %936 = vmatpush1.bf16.msra.mxu0 0
    %937 = vmatprep.subr.bf16.mxu0 0
    %938 = vmatpush1.bf16.msra.mxu0 0
    %939 = vmatprep.subr.bf16.mxu0 0
    %940 = vmatpush1.bf16.msra.mxu0 0
    %941 = vmatprep.subr.bf16.mxu0 0
    %942 = vmatpush1.bf16.msra.mxu0 0
    %943 = vmatprep.subr.bf16.mxu0 0
    %944 = vmatpush1.bf16.msra.mxu0 0
    %945 = vmatprep.subr.bf16.mxu0 0
    %946 = vmatpush1.bf16.msra.mxu0 0
    %947 = vmatprep.subr.bf16.mxu0 0
    %948 = vmatpush1.bf16.msra.mxu0 0
    %949 = vmatprep.mubr.bf16.mxu0 0
    %950 = vmatmul.mubr.bf16.gmra.mrb[0].mxu0 %v894
    %v951 = vpop.f32.mrb[0].mxu0
    %v952 = vadd.f32 0.0, %v951
    %v953 = vpop.f32.mrb[0].mxu0
    %v954 = vpop.f32.mrb[0].mxu0
    %v955 = vadd.f32 0.0, %v954
    %v956 = vpop.f32.mrb[0].mxu0
    %957 = vmatprep.mubr.bf16.mxu0 0
    %958 = vmatmul.mubr.bf16.gmra.mrb[0].mxu0 %v897
    %v959 = vpop.f32.mrb[0].mxu0
    %v960 = vadd.f32 0.0, %v959
    %v961 = vpop.f32.mrb[0].mxu0
    %v962 = vpop.f32.mrb[0].mxu0
    %v963 = vadd.f32 0.0, %v962
    %v964 = vpop.f32.mrb[0].mxu0
    %965 = vmatprep.mubr.bf16.mxu0 0
    %966 = vmatmul.mubr.bf16.gmra.mrb[0].mxu0 %v900
    %v967 = vpop.f32.mrb[0].mxu0
    %v968 = vadd.f32 0.0, %v967
    %v969 = vpop.f32.mrb[0].mxu0
    %v970 = vpop.f32.mrb[0].mxu0
    %v971 = vadd.f32 0.0, %v970
    %v972 = vpop.f32.mrb[0].mxu0
    %973 = vmatprep.mubr.bf16.mxu0 0
    %974 = vmatmul.mubr.bf16.gmra.mrb[0].mxu0 %v903
    %v975 = vpop.f32.mrb[0].mxu0
    %v976 = vadd.f32 0.0, %v975
    %v977 = vpop.f32.mrb[0].mxu0
    %v978 = vpop.f32.mrb[0].mxu0
    %v979 = vadd.f32 0.0, %v978
    %v980 = vpop.f32.mrb[0].mxu0
    %981 = vmatprep.mubr.bf16.mxu0 0
    %982 = vmatmul.mubr.bf16.gmra.mrb[0].mxu0 %v906
    %v983 = vpop.f32.mrb[0].mxu0
    %v984 = vadd.f32 0.0, %v983
    %v985 = vpop.f32.mrb[0].mxu0
    %v986 = vpop.f32.mrb[0].mxu0
    %v987 = vadd.f32 0.0, %v986
    %v988 = vpop.f32.mrb[0].mxu0
    %989 = vmatprep.mubr.bf16.mxu0 0
    %990 = vmatmul.mubr.bf16.gmra.mrb[0].mxu0 %v909
    %v991 = vpop.f32.mrb[0].mxu0
    %v992 = vadd.f32 0.0, %v991
    %v993 = vpop.f32.mrb[0].mxu0
    %v994 = vpop.f32.mrb[0].mxu0
    %v995 = vadd.f32 0.0, %v994
    %v996 = vpop.f32.mrb[0].mxu0
    %997 = vmatprep.mubr.bf16.mxu0 0
    %998 = vmatmul.mubr.bf16.gmra.mrb[0].mxu0 %v912
    %v999 = vpop.f32.mrb[0].mxu0
    %v1000 = vadd.f32 0.0, %v999
    %v1001 = vpop.f32.mrb[0].mxu0
    %v1002 = vpop.f32.mrb[0].mxu0
    %v1003 = vadd.f32 0.0, %v1002
    %v1004 = vpop.f32.mrb[0].mxu0
    %1005 = vmatprep.mubr.bf16.mxu0 0
    %1006 = vmatmul.mubr.bf16.gmra.mrb[0].mxu0 %v915
    %v1007 = vpop.f32.mrb[0].mxu0
    %v1008 = vadd.f32 0.0, %v1007
    %v1009 = vpop.f32.mrb[0].mxu0
    %v1010 = vpop.f32.mrb[0].mxu0
    %v1011 = vadd.f32 0.0, %v1010
    %v1012 = vpop.f32.mrb[0].mxu0
    %1013 = vdwg.mxu0
    %v1014 = vadd.f32 %v847, %v952
    %v1015 = vadd.f32 %v848, %v955
    %v1016 = vadd.f32 %v849, %v960
    %v1017 = vadd.f32 %v850, %v963
    %v1018 = vadd.f32 %v851, %v968
    %v1019 = vadd.f32 %v852, %v971
    %v1020 = vadd.f32 %v853, %v976
    %v1021 = vadd.f32 %v854, %v979
    %v1022 = vadd.f32 %v855, %v984
    %v1023 = vadd.f32 %v856, %v987
    %v1024 = vadd.f32 %v857, %v992
    %v1025 = vadd.f32 %v858, %v995
    %v1026 = vadd.f32 %v859, %v1000
    %v1027 = vadd.f32 %v860, %v1003
    %v1028 = vadd.f32 %v861, %v1008
    %v1029 = vadd.f32 %v862, %v1011
    %v1030 = vmax.f32 %v1014, %v1015
    %v1031 = vrot.slane %v1030, 4
    %v1032 = vmax.f32 %v1030, %v1031
    %v1033 = vrot.slane %v1032, 2
    %v1034 = vmax.f32 %v1032, %v1033
    %v1035 = vrot.slane %v1034, 1
    %v1036 = vmax.f32 %v1034, %v1035
    %v1037 = vmax.f32 %v1016, %v1017
    %v1038 = vrot.slane %v1037, 4
    %v1039 = vmax.f32 %v1037, %v1038
    %v1040 = vrot.slane %v1039, 2
    %v1041 = vmax.f32 %v1039, %v1040
    %v1042 = vrot.slane %v1041, 1
    %v1043 = vmax.f32 %v1041, %v1042
    %v1044 = vmax.f32 %v1018, %v1019
    %v1045 = vrot.slane %v1044, 4
    %v1046 = vmax.f32 %v1044, %v1045
    %v1047 = vrot.slane %v1046, 2
    %v1048 = vmax.f32 %v1046, %v1047
    %v1049 = vrot.slane %v1048, 1
    %v1050 = vmax.f32 %v1048, %v1049
    %v1051 = vmax.f32 %v1020, %v1021
    %v1052 = vrot.slane %v1051, 4
    %v1053 = vmax.f32 %v1051, %v1052
    %v1054 = vrot.slane %v1053, 2
    %v1055 = vmax.f32 %v1053, %v1054
    %v1056 = vrot.slane %v1055, 1
    %v1057 = vmax.f32 %v1055, %v1056
    %v1058 = vmax.f32 %v1022, %v1023
    %v1059 = vrot.slane %v1058, 4
    %v1060 = vmax.f32 %v1058, %v1059
    %v1061 = vrot.slane %v1060, 2
    %v1062 = vmax.f32 %v1060, %v1061
    %v1063 = vrot.slane %v1062, 1
    %v1064 = vmax.f32 %v1062, %v1063
    %v1065 = vmax.f32 %v1024, %v1025
    %v1066 = vrot.slane %v1065, 4
    %v1067 = vmax.f32 %v1065, %v1066
    %v1068 = vrot.slane %v1067, 2
    %v1069 = vmax.f32 %v1067, %v1068
    %v1070 = vrot.slane %v1069, 1
    %v1071 = vmax.f32 %v1069, %v1070
    %v1072 = vmax.f32 %v1026, %v1027
    %v1073 = vrot.slane %v1072, 4
    %v1074 = vmax.f32 %v1072, %v1073
    %v1075 = vrot.slane %v1074, 2
    %v1076 = vmax.f32 %v1074, %v1075
    %v1077 = vrot.slane %v1076, 1
    %v1078 = vmax.f32 %v1076, %v1077
    %v1079 = vmax.f32 %v1028, %v1029
    %v1080 = vrot.slane %v1079, 4
    %v1081 = vmax.f32 %v1079, %v1080
    %v1082 = vrot.slane %v1081, 2
    %v1083 = vmax.f32 %v1081, %v1082
    %v1084 = vrot.slane %v1083, 1
    %v1085 = vmax.f32 %v1083, %v1084
    %v1086 = vmax.f32 %v1036, 0.0
    %v1087 = vmax.f32 %v1043, 0.0
    %v1088 = vmax.f32 %v1050, 0.0
    %v1089 = vmax.f32 %v1057, 0.0
    %v1090 = vmax.f32 %v1064, 0.0
    %v1091 = vmax.f32 %v1071, 0.0
    %v1092 = vmax.f32 %v1078, 0.0
    %v1093 = vmax.f32 %v1085, 0.0
    %v1094 = vld [vmem:[%s2] sm:$0x1]
    %v1096 = vlaneseq
    %v1097 = vshrl.u32 %v1096, 7
    %v1098 = vsub.s32 0, %v1097
    %v1099 = vrot.slane %v1094, %v1098
    %v1101 = vadd.f32 %v1086, %v1099
    %v1102 = vadd.f32 %v1087, %v1099
    %v1103 = vadd.f32 %v1088, %v1099
    %v1104 = vadd.f32 %v1089, %v1099
    %v1105 = vadd.f32 %v1090, %v1099
    %v1106 = vadd.f32 %v1091, %v1099
    %v1107 = vadd.f32 %v1092, %v1099
    %v1108 = vadd.f32 %v1093, %v1099
    %v1109 = vmax.f32 %v1101, 0.0
    %v1110 = vmax.f32 %v1102, 0.0
    %v1111 = vmax.f32 %v1103, 0.0
    %v1112 = vmax.f32 %v1104, 0.0
    %v1113 = vmax.f32 %v1105, 0.0
    %v1114 = vmax.f32 %v1106, 0.0
    %v1115 = vmax.f32 %v1107, 0.0
    %v1116 = vmax.f32 %v1108, 0.0
    %v1125 = vrot.slane %v1110, 7
    %vm1126 = vcmask 1041409
    %v1127 = vsel %vm1126, %v1125, %v1109
    %v1128 = vrot.slane %v1111, 6
    %vm1129 = vcmask 1042434
    %v1130 = vsel %vm1129, %v1128, %v1127
    %v1131 = vrot.slane %v1112, 5
    %vm1132 = vcmask 1043459
    %v1133 = vsel %vm1132, %v1131, %v1130
    %v1134 = vrot.slane %v1113, 4
    %vm1135 = vcmask 1044484
    %v1136 = vsel %vm1135, %v1134, %v1133
    %v1137 = vrot.slane %v1114, 3
    %vm1138 = vcmask 1045509
    %v1139 = vsel %vm1138, %v1137, %v1136
    %v1140 = vrot.slane %v1115, 2
    %vm1141 = vcmask 1046534
    %v1142 = vsel %vm1141, %v1140, %v1139
    %v1143 = vrot.slane %v1116, 1
    %vm1144 = vcmask 1047559
    %v1145 = vsel %vm1144, %v1143, %v1142
    %1147 = vst [vmem:[#allocation7] sm:$0xff] %v1145
    // Predicated region
    $region22: #{tpu_custom_call.1} parent=1 // pred_check
      _
    $region23: #{tpu_custom_call.1} parent=1 // pred_check_branch
      %1149 = sbr.rel (0) target = $region25
    $region24: #{tpu_custom_call.1} parent=1 // pred_region
      %s1151 = ssub.s32 128, 128
      %1152 = vsyncadd [#allocation4], %s1151
      %s1154 = sshll.u32 [#allocation7], 4
      %s1155 = int_to_ptr.vmem [resolvable:$true] %s1154
      %1157 = dma.vmem_to_hbm [thread:$0]  %s1155, 128, %s3, [#allocation4]
    $region25: #{tpu_custom_call.1} parent=1 // pred_fallthru
      _
    // Predicated region
    $region26: #{tpu_custom_call.1} parent=1 // pred_check
      _
    $region27: #{tpu_custom_call.1} parent=1 // pred_check_branch
      %1159 = sbr.rel (0) target = $region29
    $region28: #{tpu_custom_call.1} parent=1 // pred_region
      %1160 = dma.done [#allocation4], 128
    $region29: #{tpu_custom_call.1} parent=1 // pred_fallthru
      _
    %1161 = vsyncpa [#allocation3], 1
    %1162 = vsyncpa [#allocation6], 1
    %1163 = vsyncpa [#allocation4], 1

</llo_original>
